<compile_context>
chip_gen: v5e
topology: v5e:2x2
jax: 0.10.0
libtpu: 0.0.40
codegen_flags: <defaults>
</compile_context>

<pallas_src>
import jax
import jax.numpy as jnp
from jax.experimental import pallas as pl
from jax.experimental.pallas import tpu as pltpu

BN_EPS = 1e-5
LANE = 128      # lane width; feature dims zero-padded to a multiple of this
SUBLANE = 8


def _round_up(v, m):
    return (v + m - 1) // m * m


def _make_mlp_kernel(num_layers, n_rows):
    """Fused (num_layers-1) x [Linear + BN(train) + ReLU] + final Linear."""
    inv_n = 1.0 / float(n_rows)

    def kernel(*refs):
        x_ref = refs[0]
        out_ref = refs[-1]
        params = refs[1:-1]          # per layer: (W_pad bf16, packed f32 [8,d])

        # Ones row used to push BN batch reductions onto the (idle) MXU.
        ones_row = jnp.ones((1, n_rows), jnp.float32)

        h = x_ref[...]
        for layer in range(num_layers - 1):
            w = params[2 * layer][...]                       # bf16 [din_p, d_p]
            pk = params[2 * layer + 1][...]                  # f32  [8, d_p]
            gamma = pk[0:1, :]
            beta = pk[1:2, :]

            # Linear on the MXU (bf16 inputs, f32 accumulate). The hidden-layer
            # bias is omitted: it is exactly cancelled by BN mean subtraction.
            z = jnp.dot(h.astype(jnp.bfloat16), w,
                        preferred_element_type=jnp.float32)

            # Training-mode BatchNorm1d stats (biased variance) via MXU.
            s = jnp.dot(ones_row, z, preferred_element_type=jnp.float32)
            sq = jnp.dot(ones_row, z * z, preferred_element_type=jnp.float32)
            mean = s * inv_n
            var = jnp.maximum(sq * inv_n - mean * mean, 0.0)

            # Fold BN affine into a single per-feature scale/shift, then ReLU.
            scale = gamma * jax.lax.rsqrt(var + BN_EPS)
            shift = beta - mean * scale
            h = jnp.maximum(z * scale + shift, 0.0)

        w = params[-2][...]                                  # bf16 [d_p, dout_p]
        bias = params[-1][...][0:1, :]                       # f32  [1, dout_p]
        out = jnp.dot(h.astype(jnp.bfloat16), w,
                      preferred_element_type=jnp.float32) + bias
        out_ref[...] = out.astype(out_ref.dtype)

    return kernel


def init_mlp_params(key, depth_of_mlp, input_dim, hidden_dim, output_dim):
    """Per-layer param tuples matching nn.Linear / nn.BatchNorm1d defaults.

    Hidden layers: (W [d_in,d_out], b [1,d_out], gamma [1,d_out], beta [1,d_out])
    Last layer:    (W [d_in,d_out], b [1,d_out])
    Weights are stored transposed ([in, out]) relative to nn.Linear.
    """
    if hidden_dim is None:
        hidden_dim = input_dim
    if depth_of_mlp < 1:
        raise ValueError("number of layers should be positive!")

    if depth_of_mlp == 1:
        dims = [(input_dim, output_dim)]
    else:
        dims = [(input_dim, hidden_dim)]
        dims += [(hidden_dim, hidden_dim)] * (depth_of_mlp - 2)
        dims += [(hidden_dim, output_dim)]

    layers = []
    for i, (d_in, d_out) in enumerate(dims):
        key, kw, kb = jax.random.split(key, 3)
        bound = 1.0 / jnp.sqrt(jnp.float32(d_in))
        w = jax.random.uniform(kw, (d_in, d_out), jnp.float32, -bound, bound)
        b = jax.random.uniform(kb, (1, d_out), jnp.float32, -bound, bound)
        is_hidden = (depth_of_mlp >= 2) and (i < depth_of_mlp - 1)
        if is_hidden:
            layers.append((w, b,
                           jnp.ones((1, d_out), jnp.float32),     # gamma
                           jnp.zeros((1, d_out), jnp.float32)))   # beta
        else:
            layers.append((w, b))
    return layers


def pack_params_for_kernel(layers):
    """Pad weights to lane multiples (bf16) and pack per-layer vectors into one
    [8, d_pad] f32 block (row0=gamma / final bias, row1=beta). Hidden-layer
    biases are dropped (cancelled by BN)."""
    kernel_inputs = []
    for i, layer in enumerate(layers):
        is_last = (i == len(layers) - 1)
        w = layer[0]
        d_in, d_out = w.shape
        d_in_p = _round_up(d_in, LANE)
        d_out_p = _round_up(d_out, LANE)

        w_p = jnp.zeros((d_in_p, d_out_p), jnp.bfloat16)
        w_p = w_p.at[:d_in, :d_out].set(w.astype(jnp.bfloat16))

        pk = jnp.zeros((SUBLANE, d_out_p), jnp.float32)
        if is_last:
            b = layer[1]
            pk = pk.at[0, :d_out].set(b[0])
        else:
            _, _, gamma, beta = layer
            pk = pk.at[0, :d_out].set(gamma[0])
            pk = pk.at[1, :d_out].set(beta[0])
        kernel_inputs.extend([w_p, pk])
    return kernel_inputs


def mlp_forward(x, kernel_inputs, num_layers, out_dim):
    n, d_in = x.shape
    # TODO(synk): mask/pad ragged batch sizes (padded rows would corrupt BN stats).
    assert n % SUBLANE == 0, "batch size must be a multiple of 8"

    d_in_p = kernel_inputs[0].shape[0]
    d_out_p = kernel_inputs[-2].shape[1]

    # Lane-pad x and feed it to the MXU as bf16 (halves its DMA).
    x_p = jnp.zeros((n, d_in_p), jnp.bfloat16).at[:, :d_in].set(
        x.astype(jnp.bfloat16))
    flat_inputs = [x_p] + list(kernel_inputs)

    # Cost estimate (matmuls + BN stats/apply) for XLA scheduling.
    flops = 0
    max_dp = d_in_p
    for i in range(num_layers):
        w = kernel_inputs[2 * i]
        flops += 2 * n * w.shape[0] * w.shape[1]
        if i < num_layers - 1:
            flops += 8 * n * w.shape[1]
        max_dp = max(max_dp, w.shape[1])
    in_bytes = sum(int(a.size) * a.dtype.itemsize for a in flat_inputs)
    out_bytes = n * d_out_p * 4
    cost = pl.CostEstimate(flops=int(flops),
                           transcendentals=int((num_layers - 1) * max_dp),
                           bytes_accessed=int(in_bytes + out_bytes))

    # Whole batch resident in VMEM: inputs + output + ~3 live f32 activations.
    vmem_need = in_bytes + out_bytes + 3 * n * max_dp * 4 + (1 << 20)
    if vmem_need > (64 << 20):
        # TODO(synk): batch-tiled grid over N with two-pass BN stats for very
        # large N (required on v7x where per-core VMEM is 64 MiB).
        raise ValueError("activation set too large for whole-batch-resident kernel")
    vmem_limit = min(max(_round_up(2 * vmem_need, 1 << 20), 32 << 20), 64 << 20)

    vmem_spec = pl.BlockSpec(memory_space=pltpu.MemorySpace.VMEM)
    out_p = pl.pallas_call(
        _make_mlp_kernel(num_layers, n),
        out_shape=jax.ShapeDtypeStruct((n, d_out_p), jnp.float32),
        in_specs=[vmem_spec] * len(flat_inputs),
        out_specs=vmem_spec,
        compiler_params=pltpu.CompilerParams(vmem_limit_bytes=int(vmem_limit)),
        cost_estimate=cost,
    )(*flat_inputs)
    return out_p[:, :out_dim]


def mlp_reference(x, layers):
    """Pure-JAX f32 reference matching the PyTorch module (training mode)."""
    h = x.astype(jnp.float32)
    for layer in layers[:-1]:
        w, b, g, be = layer
        z = h @ w + b
        mean = jnp.mean(z, axis=0, keepdims=True)
        var = jnp.mean((z - mean) ** 2, axis=0, keepdims=True)
        h = jnp.maximum((z - mean) / jnp.sqrt(var + BN_EPS) * g + be, 0.0)
    w, b = layers[-1]
    return h @ w + b


if __name__ == "__main__":
    depth_of_mlp = 3
    input_dim = 16
    hidden_dim = 32
    output_dim = 8
    n = 64  # batch / number of graph nodes

    key = jax.random.PRNGKey(0)
    key, kx = jax.random.split(key)
    x = jax.random.normal(kx, (n, input_dim), jnp.float32)

    layers = init_mlp_params(key, depth_of_mlp, input_dim, hidden_dim, output_dim)
    kernel_inputs = pack_params_for_kernel(layers)

    out = mlp_forward(x, kernel_inputs, depth_of_mlp, output_dim)
    out = jax.block_until_ready(out)

    ref = mlp_reference(x, layers)
    assert out.shape == (n, output_dim)
    max_err = float(jnp.max(jnp.abs(out - ref)))
    # Tolerance accounts for bf16 weight/activation quantization in the kernel.
    assert jnp.allclose(out, ref, atol=2e-2, rtol=2e-2), (
        f"mismatch vs reference, max abs err {max_err}")

    print("KERNEL_OK")
</pallas_src>

<mosaic_0001>
module attributes {stable_mosaic.version = 11 : i64} {
  func.func @kernel(%arg0: memref<64x128xbf16, #tpu.memory_space<vmem>>, %arg1: memref<128x128xbf16, #tpu.memory_space<vmem>>, %arg2: memref<8x128xf32, #tpu.memory_space<vmem>>, %arg3: memref<128x128xbf16, #tpu.memory_space<vmem>>, %arg4: memref<8x128xf32, #tpu.memory_space<vmem>>, %arg5: memref<128x128xbf16, #tpu.memory_space<vmem>>, %arg6: memref<8x128xf32, #tpu.memory_space<vmem>>, %arg7: memref<64x128xf32, #tpu.memory_space<vmem>>) attributes {dimension_semantics = [], scalar_prefetch = 0 : i64, scratch_operands = 0 : i64, tpu.core_type = #tpu.core_type<tc>} {
    %cst = arith.constant 1.000000e+00 : f32
    %0 = vector.broadcast %cst : f32 to vector<1x64xf32>
    %c0 = arith.constant 0 : index
    %c0_0 = arith.constant 0 : index
    %1 = vector.load %arg0[%c0, %c0_0] : memref<64x128xbf16, #tpu.memory_space<vmem>>, vector<64x128xbf16>
    %c0_1 = arith.constant 0 : index
    %c0_2 = arith.constant 0 : index
    %2 = vector.load %arg1[%c0_1, %c0_2] : memref<128x128xbf16, #tpu.memory_space<vmem>>, vector<128x128xbf16>
    %c0_3 = arith.constant 0 : index
    %c0_4 = arith.constant 0 : index
    %3 = vector.load %arg2[%c0_3, %c0_4] : memref<8x128xf32, #tpu.memory_space<vmem>>, vector<8x128xf32>
    %4 = vector.extract_strided_slice %3 {offsets = [0, 0], sizes = [1, 128], strides = [1, 1]} : vector<8x128xf32> to vector<1x128xf32>
    %5 = vector.extract_strided_slice %3 {offsets = [1, 0], sizes = [1, 128], strides = [1, 1]} : vector<8x128xf32> to vector<1x128xf32>
    %cst_5 = arith.constant dense<0.000000e+00> : vector<64x128xf32>
    %6 = tpu.matmul %1, %2, %cst_5 {dimension_numbers = #tpu.dot_dimension_numbers<[1], [0], [0], [1], [0, 0, 1, 1], [], []>} : vector<64x128xbf16>, vector<128x128xbf16>, vector<64x128xf32> -> vector<64x128xf32>
    %cst_6 = arith.constant dense<0.000000e+00> : vector<1x128xf32>
    %7 = tpu.matmul %0, %6, %cst_6 {dimension_numbers = #tpu.dot_dimension_numbers<[1], [0], [0], [1], [0, 0, 1, 1], [], []>} : vector<1x64xf32>, vector<64x128xf32>, vector<1x128xf32> -> vector<1x128xf32>
    %8 = arith.mulf %6, %6 : vector<64x128xf32>
    %cst_7 = arith.constant dense<0.000000e+00> : vector<1x128xf32>
    %9 = tpu.matmul %0, %8, %cst_7 {dimension_numbers = #tpu.dot_dimension_numbers<[1], [0], [0], [1], [0, 0, 1, 1], [], []>} : vector<1x64xf32>, vector<64x128xf32>, vector<1x128xf32> -> vector<1x128xf32>
    %cst_8 = arith.constant 1.562500e-02 : f32
    %10 = vector.broadcast %cst_8 : f32 to vector<1x128xf32>
    %11 = arith.mulf %7, %10 : vector<1x128xf32>
    %cst_9 = arith.constant 1.562500e-02 : f32
    %12 = vector.broadcast %cst_9 : f32 to vector<1x128xf32>
    %13 = arith.mulf %9, %12 : vector<1x128xf32>
    %14 = arith.mulf %11, %11 : vector<1x128xf32>
    %15 = arith.subf %13, %14 : vector<1x128xf32>
    %cst_10 = arith.constant 0.000000e+00 : f32
    %16 = vector.broadcast %cst_10 : f32 to vector<1x128xf32>
    %17 = arith.maximumf %15, %16 : vector<1x128xf32>
    %cst_11 = arith.constant 9.99999974E-6 : f32
    %18 = vector.broadcast %cst_11 : f32 to vector<1x128xf32>
    %19 = arith.addf %17, %18 : vector<1x128xf32>
    %20 = math.rsqrt %19 : vector<1x128xf32>
    %21 = arith.mulf %4, %20 : vector<1x128xf32>
    %22 = arith.mulf %11, %21 : vector<1x128xf32>
    %23 = arith.subf %5, %22 : vector<1x128xf32>
    %24 = vector.broadcast %21 : vector<1x128xf32> to vector<64x128xf32>
    %25 = arith.mulf %6, %24 : vector<64x128xf32>
    %26 = vector.broadcast %23 : vector<1x128xf32> to vector<64x128xf32>
    %27 = arith.addf %25, %26 : vector<64x128xf32>
    %cst_12 = arith.constant 0.000000e+00 : f32
    %28 = vector.broadcast %cst_12 : f32 to vector<64x128xf32>
    %29 = arith.maximumf %27, %28 : vector<64x128xf32>
    %c0_13 = arith.constant 0 : index
    %c0_14 = arith.constant 0 : index
    %30 = vector.load %arg3[%c0_13, %c0_14] : memref<128x128xbf16, #tpu.memory_space<vmem>>, vector<128x128xbf16>
    %c0_15 = arith.constant 0 : index
    %c0_16 = arith.constant 0 : index
    %31 = vector.load %arg4[%c0_15, %c0_16] : memref<8x128xf32, #tpu.memory_space<vmem>>, vector<8x128xf32>
    %32 = vector.extract_strided_slice %31 {offsets = [0, 0], sizes = [1, 128], strides = [1, 1]} : vector<8x128xf32> to vector<1x128xf32>
    %33 = vector.extract_strided_slice %31 {offsets = [1, 0], sizes = [1, 128], strides = [1, 1]} : vector<8x128xf32> to vector<1x128xf32>
    %34 = arith.truncf %29 : vector<64x128xf32> to vector<64x128xbf16>
    %cst_17 = arith.constant dense<0.000000e+00> : vector<64x128xf32>
    %35 = tpu.matmul %34, %30, %cst_17 {dimension_numbers = #tpu.dot_dimension_numbers<[1], [0], [0], [1], [0, 0, 1, 1], [], []>} : vector<64x128xbf16>, vector<128x128xbf16>, vector<64x128xf32> -> vector<64x128xf32>
    %cst_18 = arith.constant dense<0.000000e+00> : vector<1x128xf32>
    %36 = tpu.matmul %0, %35, %cst_18 {dimension_numbers = #tpu.dot_dimension_numbers<[1], [0], [0], [1], [0, 0, 1, 1], [], []>} : vector<1x64xf32>, vector<64x128xf32>, vector<1x128xf32> -> vector<1x128xf32>
    %37 = arith.mulf %35, %35 : vector<64x128xf32>
    %cst_19 = arith.constant dense<0.000000e+00> : vector<1x128xf32>
    %38 = tpu.matmul %0, %37, %cst_19 {dimension_numbers = #tpu.dot_dimension_numbers<[1], [0], [0], [1], [0, 0, 1, 1], [], []>} : vector<1x64xf32>, vector<64x128xf32>, vector<1x128xf32> -> vector<1x128xf32>
    %cst_20 = arith.constant 1.562500e-02 : f32
    %39 = vector.broadcast %cst_20 : f32 to vector<1x128xf32>
    %40 = arith.mulf %36, %39 : vector<1x128xf32>
    %cst_21 = arith.constant 1.562500e-02 : f32
    %41 = vector.broadcast %cst_21 : f32 to vector<1x128xf32>
    %42 = arith.mulf %38, %41 : vector<1x128xf32>
    %43 = arith.mulf %40, %40 : vector<1x128xf32>
    %44 = arith.subf %42, %43 : vector<1x128xf32>
    %cst_22 = arith.constant 0.000000e+00 : f32
    %45 = vector.broadcast %cst_22 : f32 to vector<1x128xf32>
    %46 = arith.maximumf %44, %45 : vector<1x128xf32>
    %cst_23 = arith.constant 9.99999974E-6 : f32
    %47 = vector.broadcast %cst_23 : f32 to vector<1x128xf32>
    %48 = arith.addf %46, %47 : vector<1x128xf32>
    %49 = math.rsqrt %48 : vector<1x128xf32>
    %50 = arith.mulf %32, %49 : vector<1x128xf32>
    %51 = arith.mulf %40, %50 : vector<1x128xf32>
    %52 = arith.subf %33, %51 : vector<1x128xf32>
    %53 = vector.broadcast %50 : vector<1x128xf32> to vector<64x128xf32>
    %54 = arith.mulf %35, %53 : vector<64x128xf32>
    %55 = vector.broadcast %52 : vector<1x128xf32> to vector<64x128xf32>
    %56 = arith.addf %54, %55 : vector<64x128xf32>
    %cst_24 = arith.constant 0.000000e+00 : f32
    %57 = vector.broadcast %cst_24 : f32 to vector<64x128xf32>
    %58 = arith.maximumf %56, %57 : vector<64x128xf32>
    %c0_25 = arith.constant 0 : index
    %c0_26 = arith.constant 0 : index
    %59 = vector.load %arg5[%c0_25, %c0_26] : memref<128x128xbf16, #tpu.memory_space<vmem>>, vector<128x128xbf16>
    %c0_27 = arith.constant 0 : index
    %c0_28 = arith.constant 0 : index
    %60 = vector.load %arg6[%c0_27, %c0_28] : memref<8x128xf32, #tpu.memory_space<vmem>>, vector<8x128xf32>
    %61 = vector.extract_strided_slice %60 {offsets = [0, 0], sizes = [1, 128], strides = [1, 1]} : vector<8x128xf32> to vector<1x128xf32>
    %62 = arith.truncf %58 : vector<64x128xf32> to vector<64x128xbf16>
    %cst_29 = arith.constant dense<0.000000e+00> : vector<64x128xf32>
    %63 = tpu.matmul %62, %59, %cst_29 {dimension_numbers = #tpu.dot_dimension_numbers<[1], [0], [0], [1], [0, 0, 1, 1], [], []>} : vector<64x128xbf16>, vector<128x128xbf16>, vector<64x128xf32> -> vector<64x128xf32>
    %64 = vector.broadcast %61 : vector<1x128xf32> to vector<64x128xf32>
    %65 = arith.addf %63, %64 : vector<64x128xf32>
    %c0_30 = arith.constant 0 : index
    %c0_31 = arith.constant 0 : index
    %66 = vector.load %arg7[%c0_30, %c0_31] : memref<64x128xf32, #tpu.memory_space<vmem>>, vector<64x128xf32>
    tpu.vector_store %arg7[%c0_30, %c0_31], %65 {strides = array<i32>} : memref<64x128xf32, #tpu.memory_space<vmem>>, vector<64x128xf32>,
    return
  }
}

</mosaic_0001>

<llo_original>
// kernel: tpu_custom_call.1
$region0: #{tpu_custom_call.1}
  #allocation0 [shape = 'u32[]', space=smem, size = 0x4, offset = 0x4, fixed_abs, tag = 'smem constant byte address 0x4 - core index']
  #allocation1 [shape = 'u32[72,128]{1,0:T(1,128)}', space=vmem, size = 0x9000, scoped, tag = 'internal scratch']
  %s0 = inlined_call_operand.hbm [shape: bf16[64,128], index: 0, kind: input, shape index: {}]
  %s1 = inlined_call_operand.hbm [shape: bf16[128,128], index: 1, kind: input, shape index: {}]
  %s2 = inlined_call_operand.hbm [shape: f32[8,128], index: 2, kind: input, shape index: {}]
  %s3 = inlined_call_operand.hbm [shape: bf16[128,128], index: 3, kind: input, shape index: {}]
  %s4 = inlined_call_operand.hbm [shape: f32[8,128], index: 4, kind: input, shape index: {}]
  %s5 = inlined_call_operand.hbm [shape: bf16[128,128], index: 5, kind: input, shape index: {}]
  %s6 = inlined_call_operand.hbm [shape: f32[8,128], index: 6, kind: input, shape index: {}]
  %s7 = inlined_call_operand.hbm [shape: f32[64,128], index: 7, kind: output, shape index: {}]
  %s8 = sld [smem:[#allocation0]]
  $region66: #{tpu_custom_call.1} parent=0
    _
  %s10 = ssub.s32 1, %s8
  %s11 = scalar_select 0, %s10, %s8
  $region1: #{tpu_custom_call.1} parent=0
    #allocation2 [shape = 'u8[16384]{0}', space=vmem, size = 0x4000, scoped, tag = 'input window, operand 0, single buffered']
    #allocation3 [shape = 's32[1]{0}', space=sflag, size = 0x4, scoped, tag = 'scoped memory for tpu_custom_call.1']
    #allocation4 [shape = 's32[1]{0}', space=sflag, size = 0x4, scoped, tag = 'scoped memory for tpu_custom_call.1']
    #allocation5 [shape = 'u8[32768]{0}', space=vmem, size = 0x8000, scoped, tag = 'input window, operand 1, single buffered']
    #allocation6 [shape = 's32[1]{0}', space=sflag, size = 0x4, scoped, tag = 'scoped memory for tpu_custom_call.1']
    #allocation7 [shape = 'u8[4096]{0}', space=vmem, size = 0x1000, scoped, tag = 'input window, operand 2, single buffered']
    #allocation8 [shape = 'u8[32768]{0}', space=vmem, size = 0x8000, scoped, tag = 'input window, operand 3, single buffered']
    #allocation9 [shape = 's32[1]{0}', space=sflag, size = 0x4, scoped, tag = 'scoped memory for tpu_custom_call.1']
    #allocation10 [shape = 'u8[4096]{0}', space=vmem, size = 0x1000, scoped, tag = 'input window, operand 4, single buffered']
    #allocation11 [shape = 'u8[32768]{0}', space=vmem, size = 0x8000, scoped, tag = 'input window, operand 5, single buffered']
    #allocation12 [shape = 's32[1]{0}', space=sflag, size = 0x4, scoped, tag = 'scoped memory for tpu_custom_call.1']
    #allocation13 [shape = 'u8[4096]{0}', space=vmem, size = 0x1000, scoped, tag = 'input window, operand 6, single buffered']
    #allocation14 [shape = 'u8[32768]{0}', space=vmem, size = 0x8000, scoped, tag = 'output window, operand 0, single buffered']
    %12 = vsyncpa [#allocation3], 0
    %13 = vsyncpa [#allocation6], 0
    %14 = vsyncpa [#allocation9], 0
    %15 = vsyncpa [#allocation12], 0
    %16 = vsyncpa [#allocation4], 0
    // Predicated region
    $region2: #{tpu_custom_call.1} parent=1 // pred_check
      _
    $region3: #{tpu_custom_call.1} parent=1 // pred_check_branch
      %18 = sbr.rel (0) target = $region5
    $region4: #{tpu_custom_call.1} parent=1 // pred_region
      %20 = vsyncadd [#allocation3], 0
      %s21 = sshll.u32 %s0, 4
      %s22 = int_to_ptr.hbm [resolvable:$true] %s21
      %s23 = sshll.u32 [#allocation2], 4
      %s24 = int_to_ptr.vmem [resolvable:$true] %s23
      %29 = dma.hbm_to_vmem [thread:$0]  %s22, 512, %s24, [#allocation3], 64, 64, 4
    $region5: #{tpu_custom_call.1} parent=1 // pred_fallthru
      _
    // Predicated region
    $region6: #{tpu_custom_call.1} parent=1 // pred_check
      _
    $region7: #{tpu_custom_call.1} parent=1 // pred_check_branch
      %31 = sbr.rel (0) target = $region9
    $region8: #{tpu_custom_call.1} parent=1 // pred_region
      %33 = vsyncadd [#allocation6], 0
      %s34 = sshll.u32 %s1, 4
      %s35 = int_to_ptr.hbm [resolvable:$true] %s34
      %s36 = sshll.u32 [#allocation5], 4
      %s37 = int_to_ptr.vmem [resolvable:$true] %s36
      %42 = dma.hbm_to_vmem [thread:$0]  %s35, 1024, %s37, [#allocation6], 64, 64, 4
    $region9: #{tpu_custom_call.1} parent=1 // pred_fallthru
      _
    // Predicated region
    $region10: #{tpu_custom_call.1} parent=1 // pred_check
      _
    $region11: #{tpu_custom_call.1} parent=1 // pred_check_branch
      %44 = sbr.rel (0) target = $region13
    $region12: #{tpu_custom_call.1} parent=1 // pred_region
      %46 = vsyncadd [#allocation6], 0
      %s48 = sshll.u32 %s2, 4
      %s49 = int_to_ptr.hbm [resolvable:$true] %s48
      %s50 = sshll.u32 [#allocation7], 4
      %s51 = int_to_ptr.vmem [resolvable:$true] %s50
      %53 = dma.hbm_to_vmem [thread:$0]  %s49, 128, %s51, [#allocation6]
    $region13: #{tpu_custom_call.1} parent=1 // pred_fallthru
      _
    // Predicated region
    $region14: #{tpu_custom_call.1} parent=1 // pred_check
      _
    $region15: #{tpu_custom_call.1} parent=1 // pred_check_branch
      %55 = sbr.rel (0) target = $region17
    $region16: #{tpu_custom_call.1} parent=1 // pred_region
      %57 = vsyncadd [#allocation9], 0
      %s58 = sshll.u32 %s3, 4
      %s59 = int_to_ptr.hbm [resolvable:$true] %s58
      %s60 = sshll.u32 [#allocation8], 4
      %s61 = int_to_ptr.vmem [resolvable:$true] %s60
      %66 = dma.hbm_to_vmem [thread:$0]  %s59, 1024, %s61, [#allocation9], 64, 64, 4
    $region17: #{tpu_custom_call.1} parent=1 // pred_fallthru
      _
    // Predicated region
    $region18: #{tpu_custom_call.1} parent=1 // pred_check
      _
    $region19: #{tpu_custom_call.1} parent=1 // pred_check_branch
      %68 = sbr.rel (0) target = $region21
    $region20: #{tpu_custom_call.1} parent=1 // pred_region
      %70 = vsyncadd [#allocation9], 0
      %s72 = sshll.u32 %s4, 4
      %s73 = int_to_ptr.hbm [resolvable:$true] %s72
      %s74 = sshll.u32 [#allocation10], 4
      %s75 = int_to_ptr.vmem [resolvable:$true] %s74
      %77 = dma.hbm_to_vmem [thread:$0]  %s73, 128, %s75, [#allocation9]
    $region21: #{tpu_custom_call.1} parent=1 // pred_fallthru
      _
    // Predicated region
    $region22: #{tpu_custom_call.1} parent=1 // pred_check
      _
    $region23: #{tpu_custom_call.1} parent=1 // pred_check_branch
      %79 = sbr.rel (0) target = $region25
    $region24: #{tpu_custom_call.1} parent=1 // pred_region
      %81 = vsyncadd [#allocation12], 0
      %s82 = sshll.u32 %s5, 4
      %s83 = int_to_ptr.hbm [resolvable:$true] %s82
      %s84 = sshll.u32 [#allocation11], 4
      %s85 = int_to_ptr.vmem [resolvable:$true] %s84
      %90 = dma.hbm_to_vmem [thread:$0]  %s83, 1024, %s85, [#allocation12], 64, 64, 4
    $region25: #{tpu_custom_call.1} parent=1 // pred_fallthru
      _
    // Predicated region
    $region26: #{tpu_custom_call.1} parent=1 // pred_check
      _
    $region27: #{tpu_custom_call.1} parent=1 // pred_check_branch
      %92 = sbr.rel (0) target = $region29
    $region28: #{tpu_custom_call.1} parent=1 // pred_region
      %94 = vsyncadd [#allocation12], 0
      %s96 = sshll.u32 %s6, 4
      %s97 = int_to_ptr.hbm [resolvable:$true] %s96
      %s98 = sshll.u32 [#allocation13], 4
      %s99 = int_to_ptr.vmem [resolvable:$true] %s98
      %101 = dma.hbm_to_vmem [thread:$0]  %s97, 128, %s99, [#allocation12]
    $region29: #{tpu_custom_call.1} parent=1 // pred_fallthru
      _
    // Predicated region
    $region30: #{tpu_custom_call.1} parent=1 // pred_check
      _
    $region31: #{tpu_custom_call.1} parent=1 // pred_check_branch
      %103 = sbr.rel (0) target = $region33
    $region32: #{tpu_custom_call.1} parent=1 // pred_region
      %105 = dma.done [#allocation3], 512
    $region33: #{tpu_custom_call.1} parent=1 // pred_fallthru
      _
    // Predicated region
    $region34: #{tpu_custom_call.1} parent=1 // pred_check
      _
    $region35: #{tpu_custom_call.1} parent=1 // pred_check_branch
      %107 = sbr.rel (0) target = $region37
    $region36: #{tpu_custom_call.1} parent=1 // pred_region
      %109 = dma.done [#allocation6], 1024
    $region37: #{tpu_custom_call.1} parent=1 // pred_fallthru
      _
    // Predicated region
    $region38: #{tpu_custom_call.1} parent=1 // pred_check
      _
    $region39: #{tpu_custom_call.1} parent=1 // pred_check_branch
      %111 = sbr.rel (0) target = $region41
    $region40: #{tpu_custom_call.1} parent=1 // pred_region
      %113 = dma.done [#allocation6], 128
    $region41: #{tpu_custom_call.1} parent=1 // pred_fallthru
      _
    // Predicated region
    $region42: #{tpu_custom_call.1} parent=1 // pred_check
      _
    $region43: #{tpu_custom_call.1} parent=1 // pred_check_branch
      %115 = sbr.rel (0) target = $region45
    $region44: #{tpu_custom_call.1} parent=1 // pred_region
      %117 = dma.done [#allocation9], 1024
    $region45: #{tpu_custom_call.1} parent=1 // pred_fallthru
      _
    // Predicated region
    $region46: #{tpu_custom_call.1} parent=1 // pred_check
      _
    $region47: #{tpu_custom_call.1} parent=1 // pred_check_branch
      %119 = sbr.rel (0) target = $region49
    $region48: #{tpu_custom_call.1} parent=1 // pred_region
      %121 = dma.done [#allocation9], 128
    $region49: #{tpu_custom_call.1} parent=1 // pred_fallthru
      _
    // Predicated region
    $region50: #{tpu_custom_call.1} parent=1 // pred_check
      _
    $region51: #{tpu_custom_call.1} parent=1 // pred_check_branch
      %123 = sbr.rel (0) target = $region53
    $region52: #{tpu_custom_call.1} parent=1 // pred_region
      %125 = dma.done [#allocation12], 1024
    $region53: #{tpu_custom_call.1} parent=1 // pred_fallthru
      _
    // Predicated region
    $region54: #{tpu_custom_call.1} parent=1 // pred_check
      _
    $region55: #{tpu_custom_call.1} parent=1 // pred_check_branch
      %127 = sbr.rel (0) target = $region57
    $region56: #{tpu_custom_call.1} parent=1 // pred_region
      %129 = dma.done [#allocation12], 128
    $region57: #{tpu_custom_call.1} parent=1 // pred_fallthru
      _
    %v130 = vld [vmem:[#allocation2] sm:$0xf]
    %v131 = vld [vmem:[#allocation2 + $0x4] sm:$0xf]
    %v132 = vld [vmem:[#allocation2 + $0x8] sm:$0xf]
    %v133 = vld [vmem:[#allocation2 + $0xc] sm:$0xf]
    %v134 = vld [vmem:[#allocation2 + $0x10] sm:$0xf]
    %v135 = vld [vmem:[#allocation2 + $0x14] sm:$0xf]
    %v136 = vld [vmem:[#allocation2 + $0x18] sm:$0xf]
    %v137 = vld [vmem:[#allocation2 + $0x1c] sm:$0xf]
    %v138 = vld [vmem:[#allocation5] sm:$0xf]
    %v139 = vld [vmem:[#allocation5 + $0x4] sm:$0xf]
    %v140 = vld [vmem:[#allocation5 + $0x8] sm:$0xf]
    %v141 = vld [vmem:[#allocation5 + $0xc] sm:$0xf]
    %v142 = vld [vmem:[#allocation5 + $0x10] sm:$0xf]
    %v143 = vld [vmem:[#allocation5 + $0x14] sm:$0xf]
    %v144 = vld [vmem:[#allocation5 + $0x18] sm:$0xf]
    %v145 = vld [vmem:[#allocation5 + $0x1c] sm:$0xf]
    %v146 = vld [vmem:[#allocation5 + $0x20] sm:$0xf]
    %v147 = vld [vmem:[#allocation5 + $0x24] sm:$0xf]
    %v148 = vld [vmem:[#allocation5 + $0x28] sm:$0xf]
    %v149 = vld [vmem:[#allocation5 + $0x2c] sm:$0xf]
    %v150 = vld [vmem:[#allocation5 + $0x30] sm:$0xf]
    %v151 = vld [vmem:[#allocation5 + $0x34] sm:$0xf]
    %v152 = vld [vmem:[#allocation5 + $0x38] sm:$0xf]
    %v153 = vld [vmem:[#allocation5 + $0x3c] sm:$0xf]
    %v154 = vld [vmem:[#allocation7] sm:$0xff]
    %v163 = vunpack.c.l.b16 %v130
    %v164 = vunpack.c.l.b16 %v131
    %v165 = vunpack.c.l.b16 %v132
    %v166 = vunpack.c.l.b16 %v133
    %v167 = vunpack.c.l.b16 %v134
    %v168 = vunpack.c.l.b16 %v135
    %v169 = vunpack.c.l.b16 %v136
    %v170 = vunpack.c.l.b16 %v137
    %v171 = vpack.c.b16 %v164, %v163
    %v172 = vpack.c.b16 %v166, %v165
    %v173 = vpack.c.b16 %v168, %v167
    %v174 = vpack.c.b16 %v170, %v169
    %v195 = vunpack.c.l.b16 %v138
    %v196 = vunpack.c.l.b16 %v139
    %v197 = vunpack.c.l.b16 %v140
    %v198 = vunpack.c.l.b16 %v141
    %v199 = vunpack.c.l.b16 %v142
    %v200 = vunpack.c.l.b16 %v143
    %v201 = vunpack.c.l.b16 %v144
    %v202 = vunpack.c.l.b16 %v145
    %v203 = vunpack.c.l.b16 %v146
    %v204 = vunpack.c.l.b16 %v147
    %v205 = vunpack.c.l.b16 %v148
    %v206 = vunpack.c.l.b16 %v149
    %v207 = vunpack.c.l.b16 %v150
    %v208 = vunpack.c.l.b16 %v151
    %v209 = vunpack.c.l.b16 %v152
    %v210 = vunpack.c.l.b16 %v153
    %v211 = vpack.c.b16 %v196, %v195
    %v212 = vpack.c.b16 %v198, %v197
    %v213 = vpack.c.b16 %v200, %v199
    %v214 = vpack.c.b16 %v202, %v201
    %v215 = vpack.c.b16 %v204, %v203
    %v216 = vpack.c.b16 %v206, %v205
    %v217 = vpack.c.b16 %v208, %v207
    %v218 = vpack.c.b16 %v210, %v209
    %227 = vmatpush.bf16.msra.mxu0 %v218
    %228 = vmatpush.bf16.msra.mxu0 %v217
    %229 = vmatpush.bf16.msra.mxu0 %v216
    %230 = vmatpush.bf16.msra.mxu0 %v215
    %231 = vmatpush.bf16.msra.mxu0 %v214
    %232 = vmatpush.bf16.msra.mxu0 %v213
    %233 = vmatpush.bf16.msra.mxu0 %v212
    %234 = vmatpush.bf16.msra.mxu0 %v211
    %235 = vmatmul.bf16.gmra.mxu0 %v171
    %v236 = vpop.f32.mrf.mxu0
    %v237 = vadd.f32 0.0, %v236
    %v238 = vpop.f32.mrf.mxu0
    %v239 = vadd.f32 0.0, %v238
    %240 = vmatmul.bf16.gmra.mxu0 %v172
    %v241 = vpop.f32.mrf.mxu0
    %v242 = vadd.f32 0.0, %v241
    %v243 = vpop.f32.mrf.mxu0
    %v244 = vadd.f32 0.0, %v243
    %245 = vmatmul.bf16.gmra.mxu0 %v173
    %v246 = vpop.f32.mrf.mxu0
    %v247 = vadd.f32 0.0, %v246
    %v248 = vpop.f32.mrf.mxu0
    %v249 = vadd.f32 0.0, %v248
    %250 = vmatmul.bf16.gmra.mxu0 %v174
    %v251 = vpop.f32.mrf.mxu0
    %v252 = vadd.f32 0.0, %v251
    %v253 = vpop.f32.mrf.mxu0
    %v254 = vadd.f32 0.0, %v253
    %255 = vdwg.mxu0
    %vm256 = vcmask 523264
    %v258 = vsel %vm256, 1.0, 0
    %260 = vmatpush.msra.mxu0 0.0
    %261 = vmatpush.msra.mxu0 0.0
    %262 = vmatpush.msra.mxu0 0.0
    %263 = vmatpush.msra.mxu0 0.0
    %264 = vmatpush.msra.mxu0 0.0
    %265 = vmatpush.msra.mxu0 0.0
    %266 = vmatpush.msra.mxu0 0.0
    %267 = vmatpush.msra.mxu0 0.0
    %268 = vmatpush.msra.mxu0 %v254
    %269 = vmatpush.msra.mxu0 %v252
    %270 = vmatpush.msra.mxu0 %v249
    %271 = vmatpush.msra.mxu0 %v247
    %272 = vmatpush.msra.mxu0 %v244
    %273 = vmatpush.msra.mxu0 %v242
    %274 = vmatpush.msra.mxu0 %v239
    %275 = vmatpush.msra.mxu0 %v237
    %276 = vmatmul.f32.gmra.mxu0 %v258
    %v277 = vpop.f32.mrf.mxu0
    %v278 = vadd.f32 0.0, %v277
    %279 = vdwg.mxu0
    %v280 = vmul.f32 %v237, %v237
    %v281 = vmul.f32 %v239, %v239
    %v282 = vmul.f32 %v242, %v242
    %v283 = vmul.f32 %v244, %v244
    %v284 = vmul.f32 %v247, %v247
    %v285 = vmul.f32 %v249, %v249
    %v286 = vmul.f32 %v252, %v252
    %v287 = vmul.f32 %v254, %v254
    %288 = vmatpush.msra.mxu0 0.0
    %289 = vmatpush.msra.mxu0 0.0
    %290 = vmatpush.msra.mxu0 0.0
    %291 = vmatpush.msra.mxu0 0.0
    %292 = vmatpush.msra.mxu0 0.0
    %293 = vmatpush.msra.mxu0 0.0
    %294 = vmatpush.msra.mxu0 0.0
    %295 = vmatpush.msra.mxu0 0.0
    %296 = vmatpush.msra.mxu0 %v287
    %297 = vmatpush.msra.mxu0 %v286
    %298 = vmatpush.msra.mxu0 %v285
    %299 = vmatpush.msra.mxu0 %v284
    %300 = vmatpush.msra.mxu0 %v283
    %301 = vmatpush.msra.mxu0 %v282
    %302 = vmatpush.msra.mxu0 %v281
    %303 = vmatpush.msra.mxu0 %v280
    %304 = vmatmul.f32.gmra.mxu0 %v258
    %v305 = vpop.f32.mrf.mxu0
    %v306 = vadd.f32 0.0, %v305
    %307 = vdwg.mxu0
    %v308 = vmul.f32 %v278, 0.015625
    %v309 = vmul.f32 %v306, 0.015625
    %v310 = vmul.f32 %v308, %v308
    %v311 = vsub.f32 %v309, %v310
    %v312 = vmax.f32 %v311, 0.0
    %v313 = vadd.f32 %v312, 1e-05
    %v314 = vrsqrt.pop %v313
    %v315 = vmul.f32 %v314, %v313
    %v316 = vmul.f32 %v315, %v314
    %v317 = vmul.f32 0.5, %v316
    %v318 = vsub.f32 1.5, %v317
    %v319 = vmul.f32 %v314, %v318
    %vm320 = vweird.f32 %v313
    %vm321 = vweird.f32 %v314
    %vm322 = vmor %vm320, %vm321
    %v323 = vsel %vm322, %v314, %v319
    %v324 = vmul.f32 %v154, %v323
    %v325 = vmul.f32 %v308, %v324
    %v327 = vrot.slane %v325, 7
    %v329 = vsub.f32 %v154, %v327
    %v330 = vperm.slane %v324, 0
    %v331 = vmul.f32 %v237, %v330
    %v332 = vmul.f32 %v239, %v330
    %v333 = vmul.f32 %v242, %v330
    %v334 = vmul.f32 %v244, %v330
    %v335 = vmul.f32 %v247, %v330
    %v336 = vmul.f32 %v249, %v330
    %v337 = vmul.f32 %v252, %v330
    %v338 = vmul.f32 %v254, %v330
    %v339 = vperm.slane %v329, 1
    %v340 = vadd.f32 %v331, %v339
    %v341 = vadd.f32 %v332, %v339
    %v342 = vadd.f32 %v333, %v339
    %v343 = vadd.f32 %v334, %v339
    %v344 = vadd.f32 %v335, %v339
    %v345 = vadd.f32 %v336, %v339
    %v346 = vadd.f32 %v337, %v339
    %v347 = vadd.f32 %v338, %v339
    %v348 = vmax.f32 %v340, 0.0
    %v349 = vmax.f32 %v341, 0.0
    %v350 = vmax.f32 %v342, 0.0
    %v351 = vmax.f32 %v343, 0.0
    %v352 = vmax.f32 %v344, 0.0
    %v353 = vmax.f32 %v345, 0.0
    %v354 = vmax.f32 %v346, 0.0
    %v355 = vmax.f32 %v347, 0.0
    %v356 = vld [vmem:[#allocation8] sm:$0xf]
    %v357 = vld [vmem:[#allocation8 + $0x4] sm:$0xf]
    %v358 = vld [vmem:[#allocation8 + $0x8] sm:$0xf]
    %v359 = vld [vmem:[#allocation8 + $0xc] sm:$0xf]
    %v360 = vld [vmem:[#allocation8 + $0x10] sm:$0xf]
    %v361 = vld [vmem:[#allocation8 + $0x14] sm:$0xf]
    %v362 = vld [vmem:[#allocation8 + $0x18] sm:$0xf]
    %v363 = vld [vmem:[#allocation8 + $0x1c] sm:$0xf]
    %v364 = vld [vmem:[#allocation8 + $0x20] sm:$0xf]
    %v365 = vld [vmem:[#allocation8 + $0x24] sm:$0xf]
    %v366 = vld [vmem:[#allocation8 + $0x28] sm:$0xf]
    %v367 = vld [vmem:[#allocation8 + $0x2c] sm:$0xf]
    %v368 = vld [vmem:[#allocation8 + $0x30] sm:$0xf]
    %v369 = vld [vmem:[#allocation8 + $0x34] sm:$0xf]
    %v370 = vld [vmem:[#allocation8 + $0x38] sm:$0xf]
    %v371 = vld [vmem:[#allocation8 + $0x3c] sm:$0xf]
    %v372 = vld [vmem:[#allocation10] sm:$0xff]
    %v373 = vpack.c.bf16 %v349, %v348
    %v374 = vpack.c.bf16 %v351, %v350
    %v375 = vpack.c.bf16 %v353, %v352
    %v376 = vpack.c.bf16 %v355, %v354
    %v393 = vunpack.c.l.b16 %v356
    %v394 = vunpack.c.l.b16 %v357
    %v395 = vunpack.c.l.b16 %v358
    %v396 = vunpack.c.l.b16 %v359
    %v397 = vunpack.c.l.b16 %v360
    %v398 = vunpack.c.l.b16 %v361
    %v399 = vunpack.c.l.b16 %v362
    %v400 = vunpack.c.l.b16 %v363
    %v401 = vunpack.c.l.b16 %v364
    %v402 = vunpack.c.l.b16 %v365
    %v403 = vunpack.c.l.b16 %v366
    %v404 = vunpack.c.l.b16 %v367
    %v405 = vunpack.c.l.b16 %v368
    %v406 = vunpack.c.l.b16 %v369
    %v407 = vunpack.c.l.b16 %v370
    %v408 = vunpack.c.l.b16 %v371
    %v409 = vpack.c.b16 %v394, %v393
    %v410 = vpack.c.b16 %v396, %v395
    %v411 = vpack.c.b16 %v398, %v397
    %v412 = vpack.c.b16 %v400, %v399
    %v413 = vpack.c.b16 %v402, %v401
    %v414 = vpack.c.b16 %v404, %v403
    %v415 = vpack.c.b16 %v406, %v405
    %v416 = vpack.c.b16 %v408, %v407
    %425 = vmatpush.bf16.msra.mxu0 %v416
    %426 = vmatpush.bf16.msra.mxu0 %v415
    %427 = vmatpush.bf16.msra.mxu0 %v414
    %428 = vmatpush.bf16.msra.mxu0 %v413
    %429 = vmatpush.bf16.msra.mxu0 %v412
    %430 = vmatpush.bf16.msra.mxu0 %v411
    %431 = vmatpush.bf16.msra.mxu0 %v410
    %432 = vmatpush.bf16.msra.mxu0 %v409
    %433 = vmatmul.bf16.gmra.mxu0 %v373
    %v434 = vpop.f32.mrf.mxu0
    %v435 = vadd.f32 0.0, %v434
    %v436 = vpop.f32.mrf.mxu0
    %v437 = vadd.f32 0.0, %v436
    %438 = vmatmul.bf16.gmra.mxu0 %v374
    %v439 = vpop.f32.mrf.mxu0
    %v440 = vadd.f32 0.0, %v439
    %v441 = vpop.f32.mrf.mxu0
    %v442 = vadd.f32 0.0, %v441
    %443 = vmatmul.bf16.gmra.mxu0 %v375
    %v444 = vpop.f32.mrf.mxu0
    %v445 = vadd.f32 0.0, %v444
    %v446 = vpop.f32.mrf.mxu0
    %v447 = vadd.f32 0.0, %v446
    %448 = vmatmul.bf16.gmra.mxu0 %v376
    %v449 = vpop.f32.mrf.mxu0
    %v450 = vadd.f32 0.0, %v449
    %v451 = vpop.f32.mrf.mxu0
    %v452 = vadd.f32 0.0, %v451
    %453 = vdwg.mxu0
    %454 = vmatpush.msra.mxu0 0.0
    %455 = vmatpush.msra.mxu0 0.0
    %456 = vmatpush.msra.mxu0 0.0
    %457 = vmatpush.msra.mxu0 0.0
    %458 = vmatpush.msra.mxu0 0.0
    %459 = vmatpush.msra.mxu0 0.0
    %460 = vmatpush.msra.mxu0 0.0
    %461 = vmatpush.msra.mxu0 0.0
    %462 = vmatpush.msra.mxu0 %v452
    %463 = vmatpush.msra.mxu0 %v450
    %464 = vmatpush.msra.mxu0 %v447
    %465 = vmatpush.msra.mxu0 %v445
    %466 = vmatpush.msra.mxu0 %v442
    %467 = vmatpush.msra.mxu0 %v440
    %468 = vmatpush.msra.mxu0 %v437
    %469 = vmatpush.msra.mxu0 %v435
    %470 = vmatmul.f32.gmra.mxu0 %v258
    %v471 = vpop.f32.mrf.mxu0
    %v472 = vadd.f32 0.0, %v471
    %473 = vdwg.mxu0
    %v474 = vmul.f32 %v435, %v435
    %v475 = vmul.f32 %v437, %v437
    %v476 = vmul.f32 %v440, %v440
    %v477 = vmul.f32 %v442, %v442
    %v478 = vmul.f32 %v445, %v445
    %v479 = vmul.f32 %v447, %v447
    %v480 = vmul.f32 %v450, %v450
    %v481 = vmul.f32 %v452, %v452
    %482 = vmatpush.msra.mxu0 0.0
    %483 = vmatpush.msra.mxu0 0.0
    %484 = vmatpush.msra.mxu0 0.0
    %485 = vmatpush.msra.mxu0 0.0
    %486 = vmatpush.msra.mxu0 0.0
    %487 = vmatpush.msra.mxu0 0.0
    %488 = vmatpush.msra.mxu0 0.0
    %489 = vmatpush.msra.mxu0 0.0
    %490 = vmatpush.msra.mxu0 %v481
    %491 = vmatpush.msra.mxu0 %v480
    %492 = vmatpush.msra.mxu0 %v479
    %493 = vmatpush.msra.mxu0 %v478
    %494 = vmatpush.msra.mxu0 %v477
    %495 = vmatpush.msra.mxu0 %v476
    %496 = vmatpush.msra.mxu0 %v475
    %497 = vmatpush.msra.mxu0 %v474
    %498 = vmatmul.f32.gmra.mxu0 %v258
    %v499 = vpop.f32.mrf.mxu0
    %v500 = vadd.f32 0.0, %v499
    %501 = vdwg.mxu0
    %v502 = vmul.f32 %v472, 0.015625
    %v503 = vmul.f32 %v500, 0.015625
    %v504 = vmul.f32 %v502, %v502
    %v505 = vsub.f32 %v503, %v504
    %v506 = vmax.f32 %v505, 0.0
    %v507 = vadd.f32 %v506, 1e-05
    %v508 = vrsqrt.pop %v507
    %v509 = vmul.f32 %v508, %v507
    %v510 = vmul.f32 %v509, %v508
    %v511 = vmul.f32 0.5, %v510
    %v512 = vsub.f32 1.5, %v511
    %v513 = vmul.f32 %v508, %v512
    %vm514 = vweird.f32 %v507
    %vm515 = vweird.f32 %v508
    %vm516 = vmor %vm514, %vm515
    %v517 = vsel %vm516, %v508, %v513
    %v518 = vmul.f32 %v372, %v517
    %v519 = vmul.f32 %v502, %v518
    %v521 = vrot.slane %v519, 7
    %v523 = vsub.f32 %v372, %v521
    %v524 = vperm.slane %v518, 0
    %v525 = vmul.f32 %v435, %v524
    %v526 = vmul.f32 %v437, %v524
    %v527 = vmul.f32 %v440, %v524
    %v528 = vmul.f32 %v442, %v524
    %v529 = vmul.f32 %v445, %v524
    %v530 = vmul.f32 %v447, %v524
    %v531 = vmul.f32 %v450, %v524
    %v532 = vmul.f32 %v452, %v524
    %v533 = vperm.slane %v523, 1
    %v534 = vadd.f32 %v525, %v533
    %v535 = vadd.f32 %v526, %v533
    %v536 = vadd.f32 %v527, %v533
    %v537 = vadd.f32 %v528, %v533
    %v538 = vadd.f32 %v529, %v533
    %v539 = vadd.f32 %v530, %v533
    %v540 = vadd.f32 %v531, %v533
    %v541 = vadd.f32 %v532, %v533
    %v542 = vmax.f32 %v534, 0.0
    %v543 = vmax.f32 %v535, 0.0
    %v544 = vmax.f32 %v536, 0.0
    %v545 = vmax.f32 %v537, 0.0
    %v546 = vmax.f32 %v538, 0.0
    %v547 = vmax.f32 %v539, 0.0
    %v548 = vmax.f32 %v540, 0.0
    %v549 = vmax.f32 %v541, 0.0
    %v550 = vld [vmem:[#allocation11] sm:$0xf]
    %v551 = vld [vmem:[#allocation11 + $0x4] sm:$0xf]
    %v552 = vld [vmem:[#allocation11 + $0x8] sm:$0xf]
    %v553 = vld [vmem:[#allocation11 + $0xc] sm:$0xf]
    %v554 = vld [vmem:[#allocation11 + $0x10] sm:$0xf]
    %v555 = vld [vmem:[#allocation11 + $0x14] sm:$0xf]
    %v556 = vld [vmem:[#allocation11 + $0x18] sm:$0xf]
    %v557 = vld [vmem:[#allocation11 + $0x1c] sm:$0xf]
    %v558 = vld [vmem:[#allocation11 + $0x20] sm:$0xf]
    %v559 = vld [vmem:[#allocation11 + $0x24] sm:$0xf]
    %v560 = vld [vmem:[#allocation11 + $0x28] sm:$0xf]
    %v561 = vld [vmem:[#allocation11 + $0x2c] sm:$0xf]
    %v562 = vld [vmem:[#allocation11 + $0x30] sm:$0xf]
    %v563 = vld [vmem:[#allocation11 + $0x34] sm:$0xf]
    %v564 = vld [vmem:[#allocation11 + $0x38] sm:$0xf]
    %v565 = vld [vmem:[#allocation11 + $0x3c] sm:$0xf]
    %v566 = vld [vmem:[#allocation13] sm:$0xff]
    %v567 = vpack.c.bf16 %v543, %v542
    %v568 = vpack.c.bf16 %v545, %v544
    %v569 = vpack.c.bf16 %v547, %v546
    %v570 = vpack.c.bf16 %v549, %v548
    %v571 = vperm.slane %v566, 0
    %v588 = vunpack.c.l.b16 %v550
    %v589 = vunpack.c.l.b16 %v551
    %v590 = vunpack.c.l.b16 %v552
    %v591 = vunpack.c.l.b16 %v553
    %v592 = vunpack.c.l.b16 %v554
    %v593 = vunpack.c.l.b16 %v555
    %v594 = vunpack.c.l.b16 %v556
    %v595 = vunpack.c.l.b16 %v557
    %v596 = vunpack.c.l.b16 %v558
    %v597 = vunpack.c.l.b16 %v559
    %v598 = vunpack.c.l.b16 %v560
    %v599 = vunpack.c.l.b16 %v561
    %v600 = vunpack.c.l.b16 %v562
    %v601 = vunpack.c.l.b16 %v563
    %v602 = vunpack.c.l.b16 %v564
    %v603 = vunpack.c.l.b16 %v565
    %v604 = vpack.c.b16 %v589, %v588
    %v605 = vpack.c.b16 %v591, %v590
    %v606 = vpack.c.b16 %v593, %v592
    %v607 = vpack.c.b16 %v595, %v594
    %v608 = vpack.c.b16 %v597, %v596
    %v609 = vpack.c.b16 %v599, %v598
    %v610 = vpack.c.b16 %v601, %v600
    %v611 = vpack.c.b16 %v603, %v602
    %620 = vmatpush.bf16.msra.mxu0 %v611
    %621 = vmatpush.bf16.msra.mxu0 %v610
    %622 = vmatpush.bf16.msra.mxu0 %v609
    %623 = vmatpush.bf16.msra.mxu0 %v608
    %624 = vmatpush.bf16.msra.mxu0 %v607
    %625 = vmatpush.bf16.msra.mxu0 %v606
    %626 = vmatpush.bf16.msra.mxu0 %v605
    %627 = vmatpush.bf16.msra.mxu0 %v604
    %628 = vmatmul.bf16.gmra.mxu0 %v567
    %v629 = vpop.f32.mrf.mxu0
    %v630 = vadd.f32 %v571, %v629
    %v631 = vpop.f32.mrf.mxu0
    %v632 = vadd.f32 %v571, %v631
    %633 = vmatmul.bf16.gmra.mxu0 %v568
    %v634 = vpop.f32.mrf.mxu0
    %v635 = vadd.f32 %v571, %v634
    %v636 = vpop.f32.mrf.mxu0
    %v637 = vadd.f32 %v571, %v636
    %638 = vmatmul.bf16.gmra.mxu0 %v569
    %v639 = vpop.f32.mrf.mxu0
    %v640 = vadd.f32 %v571, %v639
    %v641 = vpop.f32.mrf.mxu0
    %v642 = vadd.f32 %v571, %v641
    %643 = vmatmul.bf16.gmra.mxu0 %v570
    %v644 = vpop.f32.mrf.mxu0
    %v645 = vadd.f32 %v571, %v644
    %v646 = vpop.f32.mrf.mxu0
    %v647 = vadd.f32 %v571, %v646
    %648 = vdwg.mxu0
    %649 = vst [vmem:[#allocation14] sm:$0xff] %v630
    %650 = vst [vmem:[#allocation14 + $0x8] sm:$0xff] %v632
    %651 = vst [vmem:[#allocation14 + $0x10] sm:$0xff] %v635
    %652 = vst [vmem:[#allocation14 + $0x18] sm:$0xff] %v637
    %653 = vst [vmem:[#allocation14 + $0x20] sm:$0xff] %v640
    %654 = vst [vmem:[#allocation14 + $0x28] sm:$0xff] %v642
    %655 = vst [vmem:[#allocation14 + $0x30] sm:$0xff] %v645
    %656 = vst [vmem:[#allocation14 + $0x38] sm:$0xff] %v647
    // Predicated region
    $region58: #{tpu_custom_call.1} parent=1 // pred_check
      _
    $region59: #{tpu_custom_call.1} parent=1 // pred_check_branch
      %658 = sbr.rel (0) target = $region61
    $region60: #{tpu_custom_call.1} parent=1 // pred_region
      %660 = vsyncadd [#allocation4], 0
      %s661 = sshll.u32 [#allocation14], 4
      %s662 = int_to_ptr.vmem [resolvable:$true] %s661
      %s663 = sshll.u32 %s7, 4
      %s664 = int_to_ptr.hbm [resolvable:$true] %s663
      %669 = dma.vmem_to_hbm [thread:$0]  %s662, 1024, %s664, [#allocation4], 128, 128, 8
    $region61: #{tpu_custom_call.1} parent=1 // pred_fallthru
      _
    // Predicated region
    $region62: #{tpu_custom_call.1} parent=1 // pred_check
      _
    $region63: #{tpu_custom_call.1} parent=1 // pred_check_branch
      %671 = sbr.rel (0) target = $region65
    $region64: #{tpu_custom_call.1} parent=1 // pred_region
      %673 = dma.done [#allocation4], 1024
    $region65: #{tpu_custom_call.1} parent=1 // pred_fallthru
      _
    %674 = vsyncpa [#allocation3], 1
    %675 = vsyncpa [#allocation6], 1
    %676 = vsyncpa [#allocation9], 1
    %677 = vsyncpa [#allocation12], 1
    %678 = vsyncpa [#allocation4], 1

</llo_original>
